<compile_context>
chip_gen: v6e
topology: v6e:2x2x1
jax: 0.10.0
libtpu: 0.0.40
codegen_flags: <defaults>
</compile_context>

<pallas_src>
import math
import functools

import numpy as np
import jax
import jax.numpy as jnp
from jax.experimental import pallas as pl
from jax.experimental.pallas import tpu as pltpu

RRELU_SLOPE = (1.0 / 8.0 + 1.0 / 3.0) / 2.0
_VMEM_LIMIT = 64 * 1024 * 1024          # safe upper bound on v5e/v6e/v7x


def _round_up(x, m):
    return ((x + m - 1) // m) * m


def _pad2(x, rows, cols):
    r, c = x.shape
    if r == rows and c == cols:
        return x
    return jnp.pad(x, ((0, rows - r), (0, cols - c)))


def _pad3(x, d1, d2):
    _, b, c = x.shape
    if b == d1 and c == d2:
        return x
    return jnp.pad(x, ((0, 0), (0, d1 - b), (0, d2 - c)))


# ---------------------------------------------------------------------------
# Host-side (numpy) graph preprocessing: sort edges by destination node block,
# pad each block's edge list to a multiple of edge_tile (>= 1 tile per block so
# every output block is zero-initialised), and build the scalar-prefetch
# tile->block / tile-first tables used by the fused edge kernel.
# ---------------------------------------------------------------------------
def build_edge_schedule(src, dst, etype, *, n_node_pad, node_block, edge_tile):
    src = np.asarray(src).astype(np.int64)
    dst = np.asarray(dst).astype(np.int64)
    etype = np.asarray(etype).astype(np.int64)
    E = int(dst.shape[0])
    n_blocks = n_node_pad // node_block

    blk = dst // node_block
    order = np.argsort(blk, kind='stable')
    blk_sorted = blk[order]
    counts = np.bincount(blk_sorted, minlength=n_blocks).astype(np.int64)
    tiles_per_blk = np.maximum(1, -(-counts // edge_tile))
    pad_counts = tiles_per_blk * edge_tile
    blk_edge_start = np.concatenate([[0], np.cumsum(pad_counts)[:-1]])
    total = int(pad_counts.sum())
    cnt_start = np.concatenate([[0], np.cumsum(counts)[:-1]])
    within = np.arange(E) - cnt_start[blk_sorted]
    pos = (blk_edge_start[blk_sorted] + within).astype(np.int64)

    src_p = np.zeros(total, np.int32)
    src_p[pos] = src[order]
    et_p = np.zeros(total, np.int32)
    et_p[pos] = etype[order]
    dstl_p = np.full(total, node_block, np.int32)     # dummy -> no one-hot hit
    dstl_p[pos] = dst[order] % node_block

    n_tiles = total // edge_tile
    tile_blk = np.repeat(np.arange(n_blocks), tiles_per_blk).astype(np.int32)
    tile_start = np.concatenate([[0], np.cumsum(tiles_per_blk)[:-1]])
    tile_first = np.zeros(n_tiles, np.int32)
    tile_first[tile_start] = 1

    return dict(
        src_idx=jnp.asarray(src_p),                                # (total,)
        etype_col=jnp.asarray(et_p.reshape(total, 1)),             # (total, 1)
        dst_local=jnp.asarray(dstl_p.reshape(n_tiles, edge_tile)), # (T, te)
        tile_block=jnp.asarray(tile_blk),                          # (T,)
        tile_first=jnp.asarray(tile_first),                        # (T,)
        n_tiles=n_tiles,
    )


# ---------------------------------------------------------------------------
# Kernel 1: fused edge message + fn.sum aggregation
#   msg_e = src_h_e @ W_n + (rel_emb @ W_n)[etype_e]
#   agg[dst] += msg_e          (one-hot MXU scatter into the resident block)
# ---------------------------------------------------------------------------
def edge_agg_kernel(tile_blk_ref, tile_first_ref,
                    src_h_ref, etype_ref, dstl_ref, relw_ref, wn_ref,
                    agg_ref):
    i = pl.program_id(0)

    @pl.when(tile_first_ref[i] == 1)
    def _():
        agg_ref[...] = jnp.zeros_like(agg_ref)

    te = src_h_ref.shape[0]
    tn = agg_ref.shape[0]
    R = relw_ref.shape[0]

    msg = jnp.dot(src_h_ref[...], wn_ref[...],
                  preferred_element_type=jnp.float32)
    rel_oh = (jax.lax.broadcasted_iota(jnp.int32, (te, R), 1)
              == etype_ref[...]).astype(jnp.float32).astype(jnp.bfloat16)
    msg = msg + jnp.dot(rel_oh, relw_ref[...],
                        preferred_element_type=jnp.float32)

    dst_oh = (jax.lax.broadcasted_iota(jnp.int32, (tn, te), 0)
              == dstl_ref[...]).astype(jnp.float32).astype(jnp.bfloat16)
    agg_ref[...] += jnp.dot(dst_oh, msg.astype(jnp.bfloat16),
                            preferred_element_type=jnp.float32)


def edge_aggregate(sched, src_h_p, relw, w_n, *, n_node_pad, node_block,
                   edge_tile):
    total, Dp = src_h_p.shape
    n_tiles = sched['n_tiles']
    grid_spec = pltpu.PrefetchScalarGridSpec(
        num_scalar_prefetch=2,
        grid=(n_tiles,),
        in_specs=[
            pl.BlockSpec((edge_tile, Dp), lambda i, tb, tf: (i, 0)),
            pl.BlockSpec((edge_tile, 1), lambda i, tb, tf: (i, 0)),
            pl.BlockSpec((1, edge_tile), lambda i, tb, tf: (i, 0)),
            pl.BlockSpec(relw.shape, lambda i, tb, tf: (0, 0)),
            pl.BlockSpec(w_n.shape, lambda i, tb, tf: (0, 0)),
        ],
        out_specs=pl.BlockSpec((node_block, Dp), lambda i, tb, tf: (tb[i], 0)),
    )
    return pl.pallas_call(
        edge_agg_kernel,
        out_shape=jax.ShapeDtypeStruct((n_node_pad, Dp), jnp.float32),
        grid_spec=grid_spec,
        compiler_params=pltpu.CompilerParams(
            dimension_semantics=("arbitrary",),
            vmem_limit_bytes=_VMEM_LIMIT),
    )(sched['tile_block'], sched['tile_first'],
      src_h_p, sched['etype_col'], sched['dst_local'], relw, w_n)


# ---------------------------------------------------------------------------
# Kernel 2: node update
#   node = agg * norm + h@evolve + sel * (h@(loop - evolve)), then eval-rrelu.
# ---------------------------------------------------------------------------
def node_update_kernel(agg_ref, h_ref, norm_ref, sel_ref, w_ref, out_ref):
    Dp = h_ref.shape[1]
    both = jnp.dot(h_ref[...].astype(jnp.bfloat16), w_ref[...],
                   preferred_element_type=jnp.float32)
    evolve = both[:, :Dp]
    delta = both[:, Dp:]
    node = agg_ref[...] * norm_ref[...] + evolve + sel_ref[...] * delta
    out_ref[...] = jnp.where(node >= 0.0, node, RRELU_SLOPE * node)


def node_update(agg, h, norm, sel, w_le, *, row_tile):
    Np, Dp = h.shape
    return pl.pallas_call(
        node_update_kernel,
        out_shape=jax.ShapeDtypeStruct((Np, Dp), jnp.float32),
        grid_spec=pltpu.PrefetchScalarGridSpec(
            num_scalar_prefetch=0, grid=(Np // row_tile,),
            in_specs=[pl.BlockSpec((row_tile, Dp), lambda i: (i, 0)),
                      pl.BlockSpec((row_tile, Dp), lambda i: (i, 0)),
                      pl.BlockSpec((row_tile, 1), lambda i: (i, 0)),
                      pl.BlockSpec((row_tile, 1), lambda i: (i, 0)),
                      pl.BlockSpec((Dp, 2 * Dp), lambda i: (0, 0))],
            out_specs=pl.BlockSpec((row_tile, Dp), lambda i: (i, 0))),
        compiler_params=pltpu.CompilerParams(
            dimension_semantics=("parallel",),
            vmem_limit_bytes=_VMEM_LIMIT),
    )(agg, h, norm, sel, w_le)


# ---------------------------------------------------------------------------
# Kernel 3: head-major K / V projection (bf16 outputs, no wrapper transpose)
# ---------------------------------------------------------------------------
def kv_head_kernel(h_ref, wk_ref, wv_ref, k_ref, v_ref):
    hb = h_ref[...].astype(jnp.bfloat16)
    H = wk_ref.shape[0]
    for hd in range(H):                      # static unroll over heads
        k_ref[hd] = jnp.dot(hb, wk_ref[hd],
                            preferred_element_type=jnp.float32
                            ).astype(jnp.bfloat16)
        v_ref[hd] = jnp.dot(hb, wv_ref[hd],
                            preferred_element_type=jnp.float32
                            ).astype(jnp.bfloat16)


def kv_project(h_keys, wk_heads, wv_heads, *, row_tile):
    Nk, Dp = h_keys.shape
    H, _, dh_p = wk_heads.shape
    out_shape = (jax.ShapeDtypeStruct((H, Nk, dh_p), jnp.bfloat16),
                 jax.ShapeDtypeStruct((H, Nk, dh_p), jnp.bfloat16))
    return pl.pallas_call(
        kv_head_kernel,
        out_shape=out_shape,
        grid_spec=pltpu.PrefetchScalarGridSpec(
            num_scalar_prefetch=0, grid=(Nk // row_tile,),
            in_specs=[pl.BlockSpec((row_tile, Dp), lambda i: (i, 0)),
                      pl.BlockSpec((H, Dp, dh_p), lambda i: (0, 0, 0)),
                      pl.BlockSpec((H, Dp, dh_p), lambda i: (0, 0, 0))],
            out_specs=(pl.BlockSpec((H, row_tile, dh_p), lambda i: (0, i, 0)),
                       pl.BlockSpec((H, row_tile, dh_p), lambda i: (0, i, 0)))),
        compiler_params=pltpu.CompilerParams(
            dimension_semantics=("parallel",),
            vmem_limit_bytes=_VMEM_LIMIT),
    )(h_keys, wk_heads, wv_heads)


# ---------------------------------------------------------------------------
# Kernel 4: flash-style multi-head attention + att_fc + gated fusion
#   grid = (q tiles "parallel", k tiles "arbitrary"); Q projected in-kernel;
#   online softmax state in VMEM scratch; finalize folds the per-head fc
#   (== concat(heads) @ Wfc) and the sigmoid-gated residual blend.
# ---------------------------------------------------------------------------
def flash_att_kernel(h_ref, k_ref, v_ref, wq_ref, wfc_ref, bfc_ref, gate_ref,
                     orig_ref, out_ref, q_scr, m_scr, l_scr, acc_scr,
                     *, scale, n_real, mask_keys):
    ki = pl.program_id(1)
    H, tk, _ = k_ref.shape

    @pl.when(ki == 0)
    def _():
        hb = h_ref[...].astype(jnp.bfloat16)
        for hd in range(H):                  # static unroll over heads
            q_scr[hd] = (jnp.dot(hb, wq_ref[hd],
                                 preferred_element_type=jnp.float32)
                         * scale).astype(jnp.bfloat16)
        m_scr[...] = jnp.full_like(m_scr, -1e30)
        l_scr[...] = jnp.zeros_like(l_scr)
        acc_scr[...] = jnp.zeros_like(acc_scr)

    s = jnp.einsum('hqe,hke->hqk', q_scr[...], k_ref[...],
                   preferred_element_type=jnp.float32)
    if mask_keys:                            # mask zero-padded key rows
        key_idx = ki * tk + jax.lax.broadcasted_iota(jnp.int32, s.shape, 2)
        s = jnp.where(key_idx < n_real, s, -1e30)

    m_prev = m_scr[...]
    m_new = jnp.maximum(m_prev, jnp.max(s, axis=-1, keepdims=True))
    alpha = jnp.exp(m_prev - m_new)
    p = jnp.exp(s - m_new)
    l_scr[...] = alpha * l_scr[...] + jnp.sum(p, axis=-1, keepdims=True)
    acc_scr[...] = alpha * acc_scr[...] + jnp.einsum(
        'hqk,hke->hqe', p.astype(jnp.bfloat16), v_ref[...],
        preferred_element_type=jnp.float32)
    m_scr[...] = m_new

    @pl.when(ki == pl.num_programs(1) - 1)
    def _():
        # exact divide (not approx reciprocal) for parity with F.softmax
        o = (acc_scr[...] / l_scr[...]).astype(jnp.bfloat16)
        fc = jnp.einsum('hqe,heo->hqo', o, wfc_ref[...],
                        preferred_element_type=jnp.float32)
        att = jnp.sum(fc, axis=0) + bfc_ref[...]
        g = jax.nn.sigmoid(gate_ref[...])
        out_ref[...] = g * orig_ref[...] + (1.0 - g) * att


def flash_att_fuse(h_q, k_hm, v_hm, wq_heads, wfc_heads, bfc, gate, orig,
                   *, scale, n_real, q_tile, k_tile):
    Nq, Dp = h_q.shape
    H, Nk, dh_p = k_hm.shape
    out_p = wfc_heads.shape[2]
    kern = functools.partial(flash_att_kernel, scale=scale, n_real=n_real,
                             mask_keys=(Nk != n_real))
    return pl.pallas_call(
        kern,
        out_shape=jax.ShapeDtypeStruct((Nq, out_p), jnp.float32),
        grid_spec=pltpu.PrefetchScalarGridSpec(
            num_scalar_prefetch=0,
            grid=(Nq // q_tile, Nk // k_tile),
            in_specs=[
                pl.BlockSpec((q_tile, Dp), lambda i, j: (i, 0)),
                pl.BlockSpec((H, k_tile, dh_p), lambda i, j: (0, j, 0)),
                pl.BlockSpec((H, k_tile, dh_p), lambda i, j: (0, j, 0)),
                pl.BlockSpec((H, Dp, dh_p), lambda i, j: (0, 0, 0)),
                pl.BlockSpec((H, dh_p, out_p), lambda i, j: (0, 0, 0)),
                pl.BlockSpec((1, out_p), lambda i, j: (0, 0)),
                pl.BlockSpec((1, out_p), lambda i, j: (0, 0)),
                pl.BlockSpec((q_tile, out_p), lambda i, j: (i, 0)),
            ],
            out_specs=pl.BlockSpec((q_tile, out_p), lambda i, j: (i, 0)),
            scratch_shapes=[
                pltpu.VMEM((H, q_tile, dh_p), jnp.bfloat16),   # q
                pltpu.VMEM((H, q_tile, 1), jnp.float32),       # m
                pltpu.VMEM((H, q_tile, 1), jnp.float32),       # l
                pltpu.VMEM((H, q_tile, dh_p), jnp.float32),    # acc
            ]),
        compiler_params=pltpu.CompilerParams(
            dimension_semantics=("parallel", "arbitrary"),
            vmem_limit_bytes=_VMEM_LIMIT),
    )(h_q, k_hm, v_hm, wq_heads, wfc_heads, bfc, gate, orig)


# ---------------------------------------------------------------------------
# Full forward (wrapper glue: padding, host-side edge schedule, tiny XLA ops)
# ---------------------------------------------------------------------------
def att_enhanced_rgcn_forward(params, graph, init_ent_emb, init_rel_emb,
                              *, num_heads, row_tile=512, edge_tile=1024,
                              q_tile=256, k_tile=512):
    node_id, src, dst, etype, norm = graph
    h0 = init_ent_emb[node_id]                       # g.ndata['h']
    N, D = h0.shape
    E = int(src.shape[0])
    Dp = _round_up(D, 128)                           # lane-dense feature dim

    row_tile = min(row_tile, _round_up(N, 8))
    n_node = _round_up(N, row_tile)
    edge_tile = min(edge_tile, _round_up(E, 8))

    sched = build_edge_schedule(src, dst, etype, n_node_pad=n_node,
                                node_block=row_tile, edge_tile=edge_tile)

    h = _pad2(h0, n_node, Dp)
    norm_col = _pad2(norm[:, None].astype(jnp.float32), n_node, 1)
    sel_col = _pad2((norm > 0).astype(jnp.float32)[:, None], n_node, 1)

    for i, lp in enumerate(params['layers']):
        w_n = _pad2(lp['weight_neighbor'], Dp, Dp)
        rel_emb = _pad2(init_rel_emb[i], init_rel_emb[i].shape[0], Dp)
        relw = jnp.dot(rel_emb, w_n).astype(jnp.bfloat16)   # (R, Dp), tiny
        evolve = _pad2(lp['evolve_loop_weight'], Dp, Dp)
        delta = _pad2(lp['loop_weight'] - lp['evolve_loop_weight'], Dp, Dp)
        w_le = jnp.concatenate([evolve, delta], axis=1).astype(jnp.bfloat16)

        # TODO(synk): replace this XLA gather with an in-kernel DMA gather of h
        # rows if N*D grows beyond what one read+write of (E, D) bf16 justifies.
        src_h = h[sched['src_idx']].astype(jnp.bfloat16)
        agg = edge_aggregate(sched, src_h, relw, w_n.astype(jnp.bfloat16),
                             n_node_pad=n_node, node_block=row_tile,
                             edge_tile=edge_tile)
        h = node_update(agg, h, norm_col, sel_col, w_le, row_tile=row_tile)

    original_output = h[:N, :D]

    # ---- multi-head attention + gated fusion (flash-tiled) ----
    OUT = params['wfc_T'].shape[1]
    out_p = _round_up(OUT, 128)
    dh = D // num_heads
    dh_p = _round_up(dh, 128)

    q_tile = min(q_tile, _round_up(N, 8))
    k_tile = min(k_tile, _round_up(N, 8))
    n_q = _round_up(N, q_tile)
    n_k = _round_up(N, k_tile)
    n_h = max(n_q, n_k)

    h_att = _pad2(h[:N], n_h, Dp)

    def to_heads(w):                                 # (D, D) -> (H, Dp, dh_p)
        w_h = w.reshape(D, num_heads, dh).transpose(1, 0, 2)
        return _pad3(w_h, Dp, dh_p).astype(jnp.bfloat16)

    wq_heads = to_heads(params['wq_T'])
    wk_heads = to_heads(params['wk_T'])
    wv_heads = to_heads(params['wv_T'])
    wfc_heads = _pad3(params['wfc_T'].reshape(num_heads, dh, OUT),
                      dh_p, out_p).astype(jnp.bfloat16)
    bfc = _pad2(params['bfc'], 1, out_p)
    gate = _pad2(params['gate'], 1, out_p)

    k_hm, v_hm = kv_project(h_att[:n_k], wk_heads, wv_heads, row_tile=k_tile)

    orig_p = jnp.zeros((n_q, out_p), jnp.float32).at[:N, :D].set(original_output)

    fused = flash_att_fuse(h_att[:n_q], k_hm, v_hm, wq_heads, wfc_heads,
                           bfc, gate, orig_p, scale=1.0 / math.sqrt(dh),
                           n_real=N, q_tile=q_tile, k_tile=k_tile)
    return fused[:N, :OUT]


# ---------------------------------------------------------------------------
if __name__ == "__main__":
    key = jax.random.PRNGKey(0)
    N, D, OUT, R, HEADS, E = 16, 32, 32, 8, 4, 48   # nodes, h_dim, out_dim,
    NUM_LAYERS = 1                                  # num_rels, heads, edges

    keys = jax.random.split(key, 16)

    def xavier(k, shape):                           # xavier_uniform, gain=relu
        gain = math.sqrt(2.0)
        a = gain * math.sqrt(6.0 / (shape[0] + shape[1]))
        return jax.random.uniform(k, shape, jnp.float32, -a, a)

    params = {
        'layers': [{
            'weight_neighbor':    xavier(keys[0], (D, D)),
            'loop_weight':        xavier(keys[1], (D, D)),
            'evolve_loop_weight': xavier(keys[2], (D, D)),
        }],
        # nn.Linear stores (out, in); pre-transposed so kernels compute x @ W
        'wq_T':  xavier(keys[3], (D, D)),
        'wk_T':  xavier(keys[4], (D, D)),
        'wv_T':  xavier(keys[5], (D, D)),
        'wfc_T': xavier(keys[6], (D, OUT)),
        'bfc':   jnp.zeros((1, OUT), jnp.float32),
        'gate':  jnp.ones((1, OUT), jnp.float32),   # nn.Parameter(torch.ones)
    }

    init_ent_emb = jax.random.normal(keys[7], (N, D), jnp.float32)
    init_rel_emb = jax.random.normal(keys[8], (NUM_LAYERS, R, D), jnp.float32)

    # synthetic graph (edge list) standing in for the DGL graph `g`
    node_id = jnp.arange(N, dtype=jnp.int32)        # g.ndata['id']
    src = jax.random.randint(keys[9],  (E,), 0, N, jnp.int32)
    dst = jax.random.randint(keys[10], (E,), 0, N, jnp.int32)
    etype = jax.random.randint(keys[11], (E,), 0, R, jnp.int32)
    in_deg = jnp.zeros((N,), jnp.float32).at[dst].add(1.0)
    norm = jnp.where(in_deg > 0, 1.0 / jnp.maximum(in_deg, 1.0), 0.0)
    graph = (node_id, src, dst, etype, norm)

    out = att_enhanced_rgcn_forward(params, graph, init_ent_emb, init_rel_emb,
                                    num_heads=HEADS)
    jax.block_until_ready(out)
    assert out.shape == (N, OUT) and out.dtype == jnp.float32
    assert bool(jnp.all(jnp.isfinite(out)))
    print("KERNEL_OK")
</pallas_src>

<mosaic_0001>
module attributes {stable_mosaic.version = 11 : i64} {
  func.func @edge_agg_kernel(%arg0: i32, %arg1: memref<1xi32, #tpu.memory_space<smem>>, %arg2: memref<1xi32, #tpu.memory_space<smem>>, %arg3: memref<48x128xbf16, #tpu.memory_space<vmem>>, %arg4: memref<48x1xi32, #tpu.memory_space<vmem>>, %arg5: memref<1x48xi32, #tpu.memory_space<vmem>>, %arg6: memref<8x128xbf16, #tpu.memory_space<vmem>>, %arg7: memref<128x128xbf16, #tpu.memory_space<vmem>>, %arg8: memref<16x128xf32, #tpu.memory_space<vmem>>) attributes {dimension_semantics = [#tpu.dimension_semantics<arbitrary>], iteration_bounds = array<i64: 1>, scalar_prefetch = 2 : i64, scratch_operands = 0 : i64, tpu.core_type = #tpu.core_type<tc>, window_params = [{transform_indices = @transform_0, window_bounds = array<i64: 48, 128>}, {transform_indices = @transform_1, window_bounds = array<i64: 48, 1>}, {transform_indices = @transform_2, window_bounds = array<i64: 1, 48>}, {pipeline_mode = #tpu.pipeline_mode<synchronous>, transform_indices = @transform_3, window_bounds = array<i64: 8, 128>}, {pipeline_mode = #tpu.pipeline_mode<synchronous>, transform_indices = @transform_4, window_bounds = array<i64: 128, 128>}, {transform_indices = @transform_5, window_bounds = array<i64: 16, 128>}]} {
    %0 = arith.index_cast %arg0 : i32 to index
    %1 = memref.load %arg2[%0] : memref<1xi32, #tpu.memory_space<smem>>
    %c1_i32 = arith.constant 1 : i32
    %2 = arith.cmpi eq, %1, %c1_i32 : i32
    %3 = arith.extui %2 : i1 to i32
    %c0_i32 = arith.constant 0 : i32
    %4 = arith.cmpi ne, %3, %c0_i32 : i32
    scf.if %4 {
      %cst_15 = arith.constant 0.000000e+00 : f32
      %30 = vector.broadcast %cst_15 : f32 to vector<16x128xf32>
      %c0_16 = arith.constant 0 : index
      %c0_17 = arith.constant 0 : index
      %31 = vector.load %arg8[%c0_16, %c0_17] : memref<16x128xf32, #tpu.memory_space<vmem>>, vector<16x128xf32>
      tpu.vector_store %arg8[%c0_16, %c0_17], %30 {strides = array<i32>} : memref<16x128xf32, #tpu.memory_space<vmem>>, vector<16x128xf32>,
    } else {
    }
    %c0 = arith.constant 0 : index
    %c0_0 = arith.constant 0 : index
    %5 = vector.load %arg3[%c0, %c0_0] : memref<48x128xbf16, #tpu.memory_space<vmem>>, vector<48x128xbf16>
    %c0_1 = arith.constant 0 : index
    %c0_2 = arith.constant 0 : index
    %6 = vector.load %arg7[%c0_1, %c0_2] : memref<128x128xbf16, #tpu.memory_space<vmem>>, vector<128x128xbf16>
    %cst = arith.constant dense<0.000000e+00> : vector<48x128xf32>
    %7 = tpu.matmul %5, %6, %cst {dimension_numbers = #tpu.dot_dimension_numbers<[1], [0], [0], [1], [0, 0, 1, 1], [], []>} : vector<48x128xbf16>, vector<128x128xbf16>, vector<48x128xf32> -> vector<48x128xf32>
    %8 = tpu.iota {dimensions = array<i32: 1>} : vector<48x8xi32>
    %c0_3 = arith.constant 0 : index
    %c0_4 = arith.constant 0 : index
    %9 = vector.load %arg4[%c0_3, %c0_4] : memref<48x1xi32, #tpu.memory_space<vmem>>, vector<48x1xi32>
    %10 = vector.broadcast %9 : vector<48x1xi32> to vector<48x8xi32>
    %11 = arith.cmpi eq, %8, %10 : vector<48x8xi32>
    %12 = arith.extui %11 : vector<48x8xi1> to vector<48x8xi32>
    %13 = arith.sitofp %12 : vector<48x8xi32> to vector<48x8xf32>
    %14 = arith.truncf %13 : vector<48x8xf32> to vector<48x8xbf16>
    %c0_5 = arith.constant 0 : index
    %c0_6 = arith.constant 0 : index
    %15 = vector.load %arg6[%c0_5, %c0_6] : memref<8x128xbf16, #tpu.memory_space<vmem>>, vector<8x128xbf16>
    %cst_7 = arith.constant dense<0.000000e+00> : vector<48x128xf32>
    %16 = tpu.matmul %14, %15, %cst_7 {dimension_numbers = #tpu.dot_dimension_numbers<[1], [0], [0], [1], [0, 0, 1, 1], [], []>} : vector<48x8xbf16>, vector<8x128xbf16>, vector<48x128xf32> -> vector<48x128xf32>
    %17 = arith.addf %7, %16 : vector<48x128xf32>
    %18 = tpu.iota {dimensions = array<i32: 0>} : vector<16x48xi32>
    %c0_8 = arith.constant 0 : index
    %c0_9 = arith.constant 0 : index
    %19 = vector.load %arg5[%c0_8, %c0_9] : memref<1x48xi32, #tpu.memory_space<vmem>>, vector<1x48xi32>
    %20 = vector.broadcast %19 : vector<1x48xi32> to vector<16x48xi32>
    %21 = arith.cmpi eq, %18, %20 : vector<16x48xi32>
    %22 = arith.extui %21 : vector<16x48xi1> to vector<16x48xi32>
    %23 = arith.sitofp %22 : vector<16x48xi32> to vector<16x48xf32>
    %24 = arith.truncf %23 : vector<16x48xf32> to vector<16x48xbf16>
    %c0_10 = arith.constant 0 : index
    %c0_11 = arith.constant 0 : index
    %25 = vector.load %arg8[%c0_10, %c0_11] : memref<16x128xf32, #tpu.memory_space<vmem>>, vector<16x128xf32>
    %26 = arith.truncf %17 : vector<48x128xf32> to vector<48x128xbf16>
    %cst_12 = arith.constant dense<0.000000e+00> : vector<16x128xf32>
    %27 = tpu.matmul %24, %26, %cst_12 {dimension_numbers = #tpu.dot_dimension_numbers<[1], [0], [0], [1], [0, 0, 1, 1], [], []>} : vector<16x48xbf16>, vector<48x128xbf16>, vector<16x128xf32> -> vector<16x128xf32>
    %28 = arith.addf %25, %27 : vector<16x128xf32>
    %c0_13 = arith.constant 0 : index
    %c0_14 = arith.constant 0 : index
    %29 = vector.load %arg8[%c0_13, %c0_14] : memref<16x128xf32, #tpu.memory_space<vmem>>, vector<16x128xf32>
    tpu.vector_store %arg8[%c0_13, %c0_14], %28 {strides = array<i32>} : memref<16x128xf32, #tpu.memory_space<vmem>>, vector<16x128xf32>,
    return
  }
  func.func @transform_0(%arg0: i32, %arg1: memref<1xi32, #tpu.memory_space<smem>>, %arg2: memref<1xi32, #tpu.memory_space<smem>>) -> (i32, i32) {
    %c0_i32 = arith.constant 0 : i32
    %c0_i32_0 = arith.constant 0 : i32
    return %arg0, %c0_i32 : i32, i32
  }
  func.func @transform_1(%arg0: i32, %arg1: memref<1xi32, #tpu.memory_space<smem>>, %arg2: memref<1xi32, #tpu.memory_space<smem>>) -> (i32, i32) {
    %c0_i32 = arith.constant 0 : i32
    %c0_i32_0 = arith.constant 0 : i32
    return %arg0, %c0_i32 : i32, i32
  }
  func.func @transform_2(%arg0: i32, %arg1: memref<1xi32, #tpu.memory_space<smem>>, %arg2: memref<1xi32, #tpu.memory_space<smem>>) -> (i32, i32) {
    %c0_i32 = arith.constant 0 : i32
    %c0_i32_0 = arith.constant 0 : i32
    return %arg0, %c0_i32 : i32, i32
  }
  func.func @transform_3(%arg0: i32, %arg1: memref<1xi32, #tpu.memory_space<smem>>, %arg2: memref<1xi32, #tpu.memory_space<smem>>) -> (i32, i32) {
    %c0_i32 = arith.constant 0 : i32
    %c0_i32_0 = arith.constant 0 : i32
    %c0_i32_1 = arith.constant 0 : i32
    return %c0_i32, %c0_i32_0 : i32, i32
  }
  func.func @transform_4(%arg0: i32, %arg1: memref<1xi32, #tpu.memory_space<smem>>, %arg2: memref<1xi32, #tpu.memory_space<smem>>) -> (i32, i32) {
    %c0_i32 = arith.constant 0 : i32
    %c0_i32_0 = arith.constant 0 : i32
    %c0_i32_1 = arith.constant 0 : i32
    return %c0_i32, %c0_i32_0 : i32, i32
  }
  func.func @transform_5(%arg0: i32, %arg1: memref<1xi32, #tpu.memory_space<smem>>, %arg2: memref<1xi32, #tpu.memory_space<smem>>) -> (i32, i32) {
    %0 = arith.index_cast %arg0 : i32 to index
    %1 = memref.load %arg1[%0] : memref<1xi32, #tpu.memory_space<smem>>
    %c0_i32 = arith.constant 0 : i32
    %c0_i32_0 = arith.constant 0 : i32
    return %1, %c0_i32 : i32, i32
  }
}

</mosaic_0001>

<llo_original>
// kernel: tpu_custom_call.1
$region0: #{tpu_custom_call.1}
  #allocation0 [shape = 'u32[]', space=smem, size = 0x4, offset = 0x4, fixed_abs, tag = 'smem constant byte address 0x4 - core index']
  #allocation1 [shape = 'u32[144,128]{1,0:T(1,128)}', space=vmem, size = 0x12000, scoped, tag = 'internal scratch']
  #allocation2 [shape = 's32[1]{0}', space=sflag, size = 0x4, scoped, tag = 'scoped memory for tpu_custom_call.1']
  #allocation3 [shape = 's32[1]{0:T(128)S(6)}', space=smem, size = 0x200, scoped, tag = 'prefetched SMEM operand 0']
  #allocation4 [shape = 's32[1]{0:T(128)S(6)}', space=smem, size = 0x200, scoped, tag = 'prefetched SMEM operand 1']
  %s0 = inlined_call_operand.<no memory space> [shape: s32[1], index: 0, kind: input, shape index: {}]
  %s1 = inlined_call_operand.<no memory space> [shape: s32[1], index: 1, kind: input, shape index: {}]
  %s2 = inlined_call_operand.vmem [shape: bf16[48,128], index: 2, kind: input, shape index: {}]
  %s3 = inlined_call_operand.vmem [shape: s32[48,1], index: 3, kind: input, shape index: {}]
  %s4 = inlined_call_operand.vmem [shape: s32[1,48], index: 4, kind: input, shape index: {}]
  %s5 = inlined_call_operand.vmem [shape: bf16[8,128], index: 5, kind: input, shape index: {}]
  %s6 = inlined_call_operand.hbm [shape: bf16[128,128], index: 6, kind: input, shape index: {}]
  %s7 = inlined_call_operand.hbm [shape: f32[16,128], index: 7, kind: output, shape index: {}]
  %s8 = sld [smem:[#allocation0]]
  $region38: #{tpu_custom_call.1} parent=0
    _
  %s10 = ssub.s32 1, %s8
  %s11 = scalar_select 0, %s10, %s8
  %12 = sst [smem:[#allocation3]] %s0
  %13 = sst [smem:[#allocation4]] %s1
  $region1: #{tpu_custom_call.1} parent=0
    #allocation5 [shape = 'u8[32768]{0}', space=vmem, size = 0x8000, scoped, tag = 'input window, operand 6, single buffered']
    #allocation6 [shape = 's32[1]{0}', space=sflag, size = 0x4, scoped, tag = 'scoped memory for tpu_custom_call.1']
    #allocation7 [shape = 's32[1]{0}', space=sflag, size = 0x4, scoped, tag = 'scoped memory for tpu_custom_call.1']
    #allocation8 [shape = 'u8[8192]{0}', space=vmem, size = 0x2000, scoped, tag = 'output window, operand 0, single buffered']
    %14 = vsyncpa [#allocation6], 0
    %15 = vsyncpa [#allocation7], 0
    // Predicated region
    $region2: #{tpu_custom_call.1} parent=1 // pred_check
      _
    $region3: #{tpu_custom_call.1} parent=1 // pred_check_branch
      %17 = sbr.rel (0) target = $region5
    $region4: #{tpu_custom_call.1} parent=1 // pred_region
      _
    $region5: #{tpu_custom_call.1} parent=1 // pred_fallthru
      _
    // Predicated region
    $region6: #{tpu_custom_call.1} parent=1 // pred_check
      _
    $region7: #{tpu_custom_call.1} parent=1 // pred_check_branch
      %19 = sbr.rel (0) target = $region9
    $region8: #{tpu_custom_call.1} parent=1 // pred_region
      _
    $region9: #{tpu_custom_call.1} parent=1 // pred_fallthru
      _
    // Predicated region
    $region10: #{tpu_custom_call.1} parent=1 // pred_check
      _
    $region11: #{tpu_custom_call.1} parent=1 // pred_check_branch
      %21 = sbr.rel (0) target = $region13
    $region12: #{tpu_custom_call.1} parent=1 // pred_region
      _
    $region13: #{tpu_custom_call.1} parent=1 // pred_fallthru
      _
    // Predicated region
    $region14: #{tpu_custom_call.1} parent=1 // pred_check
      _
    $region15: #{tpu_custom_call.1} parent=1 // pred_check_branch
      %23 = sbr.rel (0) target = $region17
    $region16: #{tpu_custom_call.1} parent=1 // pred_region
      _
    $region17: #{tpu_custom_call.1} parent=1 // pred_fallthru
      _
    // Predicated region
    $region18: #{tpu_custom_call.1} parent=1 // pred_check
      _
    $region19: #{tpu_custom_call.1} parent=1 // pred_check_branch
      %25 = sbr.rel (0) target = $region21
    $region20: #{tpu_custom_call.1} parent=1 // pred_region
      %s27 = ssub.s32 1024, 1024
      %28 = vsyncadd [#allocation6], %s27
      %s29 = sshll.u32 [#allocation5], 4
      %s30 = int_to_ptr.vmem [resolvable:$true] %s29
      %35 = dma.hbm_to_vmem [thread:$0]  %s6, 1024, %s30, [#allocation6], 64, 64, 4
    $region21: #{tpu_custom_call.1} parent=1 // pred_fallthru
      _
    // Predicated region
    $region22: #{tpu_custom_call.1} parent=1 // pred_check
      _
    $region23: #{tpu_custom_call.1} parent=1 // pred_check_branch
      %37 = sbr.rel (0) target = $region25
    $region24: #{tpu_custom_call.1} parent=1 // pred_region
      %38 = dma.done [#allocation6], 1024
    $region25: #{tpu_custom_call.1} parent=1 // pred_fallthru
      _
    %s39 = sld [smem:[#allocation3]]
    %s40 = smul.u32 2, %s39
    %s42 = sld [smem:[#allocation4]]
    %p43 = scmp.eq.s32.totalorder %s42, 1
    // Predicated region
    $region26: #{tpu_custom_call.1} parent=1 // pred_check
      %p44 = pneg %p43
    $region27: #{tpu_custom_call.1} parent=1 // pred_check_branch
      %46 = sbr.rel (%p44) target = $region29
    $region28: #{tpu_custom_call.1} parent=1 // pred_region
      %47 = vst [vmem:[#allocation8] sm:$0xff] 0.0
      %48 = vst [vmem:[#allocation8 + $0x8] sm:$0xff] 0.0
    $region29: #{tpu_custom_call.1} parent=1 // pred_fallthru
      _
    %v49 = vld [vmem:[%s2] sm:$0xf]
    %v50 = vld [vmem:[%s2 + $0x4] sm:$0xf]
    %v51 = vld [vmem:[%s2 + $0x8] sm:$0xf]
    %v52 = vld [vmem:[%s2 + $0xc] sm:$0xf]
    %v53 = vld [vmem:[%s2 + $0x10] sm:$0xf]
    %v54 = vld [vmem:[%s2 + $0x14] sm:$0xf]
    %v55 = vld [vmem:[#allocation5] sm:$0xf]
    %v56 = vld [vmem:[#allocation5 + $0x4] sm:$0xf]
    %v57 = vld [vmem:[#allocation5 + $0x8] sm:$0xf]
    %v58 = vld [vmem:[#allocation5 + $0xc] sm:$0xf]
    %v59 = vld [vmem:[#allocation5 + $0x10] sm:$0xf]
    %v60 = vld [vmem:[#allocation5 + $0x14] sm:$0xf]
    %v61 = vld [vmem:[#allocation5 + $0x18] sm:$0xf]
    %v62 = vld [vmem:[#allocation5 + $0x1c] sm:$0xf]
    %v63 = vld [vmem:[#allocation5 + $0x20] sm:$0xf]
    %v64 = vld [vmem:[#allocation5 + $0x24] sm:$0xf]
    %v65 = vld [vmem:[#allocation5 + $0x28] sm:$0xf]
    %v66 = vld [vmem:[#allocation5 + $0x2c] sm:$0xf]
    %v67 = vld [vmem:[#allocation5 + $0x30] sm:$0xf]
    %v68 = vld [vmem:[#allocation5 + $0x34] sm:$0xf]
    %v69 = vld [vmem:[#allocation5 + $0x38] sm:$0xf]
    %v70 = vld [vmem:[#allocation5 + $0x3c] sm:$0xf]
    %v71 = vlaneseq
    %v72 = vand.u32 %v71, 127
    %v73 = vld [vmem:[%s3] sm:$0xff]
    %v74 = vld [vmem:[%s3 + $0x8] sm:$0xff]
    %v75 = vld [vmem:[%s3 + $0x10] sm:$0xff]
    %v76 = vld [vmem:[%s3 + $0x18] sm:$0xff]
    %v77 = vld [vmem:[%s3 + $0x20] sm:$0xff]
    %v78 = vld [vmem:[%s3 + $0x28] sm:$0xff]
    %79 = vset.pattern.permute.xlu0 0
    %80 = vperm.xlu0 %79, %v73
    %v81 = vpop.permute.xlu0 %80
    %82 = vset.pattern.permute.xlu0 0
    %83 = vperm.xlu0 %82, %v74
    %v84 = vpop.permute.xlu0 %83
    %85 = vset.pattern.permute.xlu0 0
    %86 = vperm.xlu0 %85, %v75
    %v87 = vpop.permute.xlu0 %86
    %88 = vset.pattern.permute.xlu0 0
    %89 = vperm.xlu0 %88, %v76
    %v90 = vpop.permute.xlu0 %89
    %91 = vset.pattern.permute.xlu0 0
    %92 = vperm.xlu0 %91, %v77
    %v93 = vpop.permute.xlu0 %92
    %94 = vset.pattern.permute.xlu0 0
    %95 = vperm.xlu0 %94, %v78
    %v96 = vpop.permute.xlu0 %95
    %vm97 = vcmp.eq.s32.totalorder %v72, %v81
    %vm98 = vcmp.eq.s32.totalorder %v72, %v84
    %vm99 = vcmp.eq.s32.totalorder %v72, %v87
    %vm100 = vcmp.eq.s32.totalorder %v72, %v90
    %vm101 = vcmp.eq.s32.totalorder %v72, %v93
    %vm102 = vcmp.eq.s32.totalorder %v72, %v96
    %v103 = vsel %vm97, 1, 0
    %v104 = vsel %vm98, 1, 0
    %v105 = vsel %vm99, 1, 0
    %v106 = vsel %vm100, 1, 0
    %v107 = vsel %vm101, 1, 0
    %v108 = vsel %vm102, 1, 0
    %v109 = vcvt.s32.f32 %v103
    %v110 = vcvt.s32.f32 %v104
    %v111 = vcvt.s32.f32 %v105
    %v112 = vcvt.s32.f32 %v106
    %v113 = vcvt.s32.f32 %v107
    %v114 = vcvt.s32.f32 %v108
    %v115 = vpack.c.bf16 %v110, %v109
    %v116 = vpack.c.bf16 %v112, %v111
    %v117 = vpack.c.bf16 %v114, %v113
    %v118 = vld [vmem:[%s5] sm:$0xf]
    %vm119 = vcmask 64512
    %v121 = vsel %vm119, %v115, 0
    %v124 = vsel %vm119, %v116, 0
    %v127 = vsel %vm119, %v117, 0
    %vm129 = vcmask 1043456
    %v131 = vsel %vm129, %v118, 0
    %133 = vmatprep.subr.bf16.mxu0 0
    %134 = vmatpush1.bf16.msra.mxu0 0
    %135 = vmatprep.subr.bf16.mxu0 0
    %136 = vmatpush1.bf16.msra.mxu0 0
    %137 = vmatprep.subr.bf16.mxu0 0
    %138 = vmatpush1.bf16.msra.mxu0 0
    %139 = vmatprep.subr.bf16.mxu0 0
    %140 = vmatpush1.bf16.msra.mxu0 0
    %141 = vmatprep.subr.bf16.mxu0 0
    %142 = vmatpush1.bf16.msra.mxu0 0
    %143 = vmatprep.subr.bf16.mxu0 0
    %144 = vmatpush1.bf16.msra.mxu0 0
    %145 = vmatprep.subr.bf16.mxu0 0
    %146 = vmatpush1.bf16.msra.mxu0 0
    %147 = vmatprep.subr.bf16.mxu0 0
    %148 = vmatpush1.bf16.msra.mxu0 %v131
    %149 = vmatprep.subr.bf16.mxu0 0
    %150 = vmatpush2.bf16.msra.mxu0 0
    %151 = vmatprep.subr.bf16.mxu0 0
    %152 = vmatpush2.bf16.msra.mxu0 0
    %153 = vmatprep.subr.bf16.mxu0 0
    %154 = vmatpush2.bf16.msra.mxu0 0
    %155 = vmatprep.subr.bf16.mxu0 0
    %156 = vmatpush2.bf16.msra.mxu0 0
    %157 = vmatprep.subr.bf16.mxu0 0
    %158 = vmatpush2.bf16.msra.mxu0 0
    %159 = vmatprep.subr.bf16.mxu0 0
    %160 = vmatpush2.bf16.msra.mxu0 0
    %161 = vmatprep.subr.bf16.mxu0 0
    %162 = vmatpush2.bf16.msra.mxu0 0
    %163 = vmatprep.subr.bf16.mxu0 0
    %164 = vmatpush2.bf16.msra.mxu0 0
    %165 = vmatprep.mubr.bf16.mxu0 0
    %166 = vmatmul.mubr.bf16.gmra.mxu0 %v121
    %v167 = vpop.f32.mrf.mxu0
    %v168 = vadd.f32 0.0, %v167
    %v169 = vpop.f32.mrf.mxu0
    %v170 = vpop.f32.mrf.mxu0
    %v171 = vadd.f32 0.0, %v170
    %v172 = vpop.f32.mrf.mxu0
    %173 = vmatprep.mubr.bf16.mxu0 0
    %174 = vmatmul.mubr.bf16.gmra.mxu0 %v124
    %v175 = vpop.f32.mrf.mxu0
    %v176 = vadd.f32 0.0, %v175
    %v177 = vpop.f32.mrf.mxu0
    %v178 = vpop.f32.mrf.mxu0
    %v179 = vadd.f32 0.0, %v178
    %v180 = vpop.f32.mrf.mxu0
    %181 = vmatprep.mubr.bf16.mxu0 0
    %182 = vmatmul.mubr.bf16.gmra.mxu0 %v127
    %v183 = vpop.f32.mrf.mxu0
    %v184 = vadd.f32 0.0, %v183
    %v185 = vpop.f32.mrf.mxu0
    %v186 = vpop.f32.mrf.mxu0
    %v187 = vadd.f32 0.0, %v186
    %v188 = vpop.f32.mrf.mxu0
    %189 = vdwg.mxu0
    %v196 = vunpack.c.l.b16 %v49
    %v197 = vunpack.c.l.b16 %v50
    %v198 = vunpack.c.l.b16 %v51
    %v199 = vunpack.c.l.b16 %v52
    %v200 = vunpack.c.l.b16 %v53
    %v201 = vunpack.c.l.b16 %v54
    %v202 = vpack.c.b16 %v197, %v196
    %v203 = vpack.c.b16 %v199, %v198
    %v204 = vpack.c.b16 %v201, %v200
    %v224 = vunpack.c.l.b16 %v55
    %v225 = vunpack.c.l.b16 %v56
    %v226 = vunpack.c.l.b16 %v57
    %v227 = vunpack.c.l.b16 %v58
    %v228 = vunpack.c.l.b16 %v59
    %v229 = vunpack.c.l.b16 %v60
    %v230 = vunpack.c.l.b16 %v61
    %v231 = vunpack.c.l.b16 %v62
    %v232 = vunpack.c.l.b16 %v63
    %v233 = vunpack.c.l.b16 %v64
    %v234 = vunpack.c.l.b16 %v65
    %v235 = vunpack.c.l.b16 %v66
    %v236 = vunpack.c.l.b16 %v67
    %v237 = vunpack.c.l.b16 %v68
    %v238 = vunpack.c.l.b16 %v69
    %v239 = vunpack.c.l.b16 %v70
    %v240 = vpack.c.b16 %v225, %v224
    %v241 = vpack.c.b16 %v227, %v226
    %v242 = vpack.c.b16 %v229, %v228
    %v243 = vpack.c.b16 %v231, %v230
    %v244 = vpack.c.b16 %v233, %v232
    %v245 = vpack.c.b16 %v235, %v234
    %v246 = vpack.c.b16 %v237, %v236
    %v247 = vpack.c.b16 %v239, %v238
    %256 = vmatprep.subr.bf16.mxu0 0
    %257 = vmatpush1.bf16.msra.mxu0 %v247
    %258 = vmatprep.subr.bf16.mxu0 0
    %259 = vmatpush1.bf16.msra.mxu0 %v246
    %260 = vmatprep.subr.bf16.mxu0 0
    %261 = vmatpush1.bf16.msra.mxu0 %v245
    %262 = vmatprep.subr.bf16.mxu0 0
    %263 = vmatpush1.bf16.msra.mxu0 %v244
    %264 = vmatprep.subr.bf16.mxu0 0
    %265 = vmatpush1.bf16.msra.mxu0 %v243
    %266 = vmatprep.subr.bf16.mxu0 0
    %267 = vmatpush1.bf16.msra.mxu0 %v242
    %268 = vmatprep.subr.bf16.mxu0 0
    %269 = vmatpush1.bf16.msra.mxu0 %v241
    %270 = vmatprep.subr.bf16.mxu0 0
    %271 = vmatpush1.bf16.msra.mxu0 %v240
    %272 = vmatprep.subr.bf16.mxu0 0
    %273 = vmatpush2.bf16.msra.mxu0 0
    %274 = vmatprep.subr.bf16.mxu0 0
    %275 = vmatpush2.bf16.msra.mxu0 0
    %276 = vmatprep.subr.bf16.mxu0 0
    %277 = vmatpush2.bf16.msra.mxu0 0
    %278 = vmatprep.subr.bf16.mxu0 0
    %279 = vmatpush2.bf16.msra.mxu0 0
    %280 = vmatprep.subr.bf16.mxu0 0
    %281 = vmatpush2.bf16.msra.mxu0 0
    %282 = vmatprep.subr.bf16.mxu0 0
    %283 = vmatpush2.bf16.msra.mxu0 0
    %284 = vmatprep.subr.bf16.mxu0 0
    %285 = vmatpush2.bf16.msra.mxu0 0
    %286 = vmatprep.subr.bf16.mxu0 0
    %287 = vmatpush2.bf16.msra.mxu0 0
    %288 = vmatprep.mubr.bf16.mxu0 0
    %289 = vmatmul.mubr.bf16.gmra.mxu0 %v202
    %v290 = vpop.f32.mrf.mxu0
    %v291 = vadd.f32 %v168, %v290
    %v292 = vpop.f32.mrf.mxu0
    %v293 = vpop.f32.mrf.mxu0
    %v294 = vadd.f32 %v171, %v293
    %v295 = vpop.f32.mrf.mxu0
    %296 = vmatprep.mubr.bf16.mxu0 0
    %297 = vmatmul.mubr.bf16.gmra.mxu0 %v203
    %v298 = vpop.f32.mrf.mxu0
    %v299 = vadd.f32 %v176, %v298
    %v300 = vpop.f32.mrf.mxu0
    %v301 = vpop.f32.mrf.mxu0
    %v302 = vadd.f32 %v179, %v301
    %v303 = vpop.f32.mrf.mxu0
    %304 = vmatprep.mubr.bf16.mxu0 0
    %305 = vmatmul.mubr.bf16.gmra.mxu0 %v204
    %v306 = vpop.f32.mrf.mxu0
    %v307 = vadd.f32 %v184, %v306
    %v308 = vpop.f32.mrf.mxu0
    %v309 = vpop.f32.mrf.mxu0
    %v310 = vadd.f32 %v187, %v309
    %v311 = vpop.f32.mrf.mxu0
    %312 = vdwg.mxu0
    %v313 = vlaneseq
    %v314 = vshrl.u32 %v313, 7
    %v315 = vadd.s32 %v314, 8
    %v316 = vld [vmem:[%s4] sm:$0x1]
    %v317 = vlaneseq
    %v318 = vshrl.u32 %v317, 7
    %v319 = vsub.s32 0, %v318
    %v320 = vrot.slane %v316, %v319
    %vm321 = vcmp.eq.s32.totalorder %v314, %v320
    %vm322 = vcmp.eq.s32.totalorder %v315, %v320
    %v323 = vsel %vm321, 1, 0
    %v324 = vsel %vm322, 1, 0
    %v325 = vcvt.s32.f32 %v323
    %v326 = vcvt.s32.f32 %v324
    %v327 = vpack.c.bf16 %v326, %v325
    %v328 = vld [vmem:[#allocation8] sm:$0xff]
    %v329 = vld [vmem:[#allocation8 + $0x8] sm:$0xff]
    %v330 = vpack.c.bf16 %v294, %v291
    %v331 = vpack.c.bf16 %v302, %v299
    %v332 = vpack.c.bf16 %v310, %v307
    %vm333 = vcmask 392192
    %v335 = vsel %vm333, %v327, 0
    %337 = vmatprep.subr.bf16.mxu0 0
    %338 = vmatpush1.bf16.msra.mxu0 0
    %339 = vmatprep.subr.bf16.mxu0 0
    %340 = vmatpush1.bf16.msra.mxu0 0
    %341 = vmatprep.subr.bf16.mxu0 0
    %342 = vmatpush1.bf16.msra.mxu0 0
    %343 = vmatprep.subr.bf16.mxu0 0
    %344 = vmatpush1.bf16.msra.mxu0 0
    %345 = vmatprep.subr.bf16.mxu0 0
    %346 = vmatpush1.bf16.msra.mxu0 0
    %347 = vmatprep.subr.bf16.mxu0 0
    %348 = vmatpush1.bf16.msra.mxu0 %v332
    %349 = vmatprep.subr.bf16.mxu0 0
    %350 = vmatpush1.bf16.msra.mxu0 %v331
    %351 = vmatprep.subr.bf16.mxu0 0
    %352 = vmatpush1.bf16.msra.mxu0 %v330
    %353 = vmatprep.subr.bf16.mxu0 0
    %354 = vmatpush2.bf16.msra.mxu0 0
    %355 = vmatprep.subr.bf16.mxu0 0
    %356 = vmatpush2.bf16.msra.mxu0 0
    %357 = vmatprep.subr.bf16.mxu0 0
    %358 = vmatpush2.bf16.msra.mxu0 0
    %359 = vmatprep.subr.bf16.mxu0 0
    %360 = vmatpush2.bf16.msra.mxu0 0
    %361 = vmatprep.subr.bf16.mxu0 0
    %362 = vmatpush2.bf16.msra.mxu0 0
    %363 = vmatprep.subr.bf16.mxu0 0
    %364 = vmatpush2.bf16.msra.mxu0 0
    %365 = vmatprep.subr.bf16.mxu0 0
    %366 = vmatpush2.bf16.msra.mxu0 0
    %367 = vmatprep.subr.bf16.mxu0 0
    %368 = vmatpush2.bf16.msra.mxu0 0
    %369 = vmatprep.mubr.bf16.mxu0 0
    %370 = vmatmul.mubr.bf16.gmra.mxu0 %v335
    %v371 = vpop.f32.mrf.mxu0
    %v372 = vadd.f32 0.0, %v371
    %v373 = vpop.f32.mrf.mxu0
    %v374 = vpop.f32.mrf.mxu0
    %v375 = vadd.f32 0.0, %v374
    %v376 = vpop.f32.mrf.mxu0
    %377 = vdwg.mxu0
    %v378 = vadd.f32 %v328, %v372
    %v379 = vadd.f32 %v329, %v375
    %380 = vst [vmem:[#allocation8] sm:$0xff] %v378
    %381 = vst [vmem:[#allocation8 + $0x8] sm:$0xff] %v379
    // Predicated region
    $region30: #{tpu_custom_call.1} parent=1 // pred_check
      _
    $region31: #{tpu_custom_call.1} parent=1 // pred_check_branch
      %383 = sbr.rel (0) target = $region33
    $region32: #{tpu_custom_call.1} parent=1 // pred_region
      %s384 = sld [smem:[#allocation3]]
      %s385 = smul.u32 2, %s384
      %s387 = ssub.s32 256, 256
      %388 = vsyncadd [#allocation7], %s387
      %s389 = smul.addr %s385, 128
      %s390 = scalar_lea.hbm %s7, %s389
      %s391 = sshll.u32 [#allocation8], 4
      %s392 = int_to_ptr.vmem [resolvable:$true] %s391
      %397 = dma.vmem_to_hbm [thread:$0]  %s392, 256, %s390, [#allocation7], 128, 128, 8
    $region33: #{tpu_custom_call.1} parent=1 // pred_fallthru
      _
    // Predicated region
    $region34: #{tpu_custom_call.1} parent=1 // pred_check
      _
    $region35: #{tpu_custom_call.1} parent=1 // pred_check_branch
      %399 = sbr.rel (0) target = $region37
    $region36: #{tpu_custom_call.1} parent=1 // pred_region
      %400 = dma.done [#allocation7], 256
    $region37: #{tpu_custom_call.1} parent=1 // pred_fallthru
      _
    %401 = vsyncpa [#allocation6], 1
    %402 = vsyncpa [#allocation7], 1

</llo_original>
